<compile_context>
chip_gen: v7x
topology: tpu7x:2x2x1
jax: 0.10.0
libtpu: 0.0.40
codegen_flags: <defaults>
</compile_context>

<pallas_src>
import jax
import jax.numpy as jnp
from jax.experimental import pallas as pl
from jax.experimental.pallas import tpu as pltpu


# Below this many elements the custom-call launch + DMA setup dwarfs the work.
_PALLAS_MIN_ELEMENTS = 64 * 1024
# ~4 MiB per logits/out buffer: with double buffering of both, comfortably
# inside v7x's 64 MiB VMEM (and trivially inside v5e/v6e's 128 MiB).
_VMEM_BYTES_PER_BUFFER = 4 * 1024 * 1024


def _diagonal_kernel(logits_ref, w_ref, b_ref, out_ref):
    # out[i, c] = logits[i, c] * W[c] + b[c]   (== logits @ diag(W) + b)
    # Single fused multiply-add per vreg: VALU stays far under budget, leaving
    # stores / HBM DMA as the only (unavoidable) bottleneck.
    out_ref[...] = logits_ref[...] * w_ref[...] + b_ref[...]


def _choose_tile_b(batch, num_classes, dtype_bytes, max_tile=2048):
    """Pick a batch-tile: multiple of 8, VMEM-bounded, <= batch."""
    if batch <= 8:
        return batch  # block equals full extent -> always layout-legal
    rows_cap = max(8, _VMEM_BYTES_PER_BUFFER // max(num_classes * dtype_bytes, 1))
    tile = min(batch, max_tile, rows_cap)
    return max(8, (tile // 8) * 8)


def _diagonal_pallas(logits, w_row, b_row, tile_b):
    batch, num_classes = logits.shape
    grid = (pl.cdiv(batch, tile_b),)
    return pl.pallas_call(
        _diagonal_kernel,
        out_shape=jax.ShapeDtypeStruct((batch, num_classes), logits.dtype),
        grid=grid,
        in_specs=[
            # logits: tiled over batch, full class extent (lane dim = full dim).
            pl.BlockSpec((tile_b, num_classes), lambda i: (i, 0)),
            # W / b: one row, reused by every grid step (broadcast over batch).
            pl.BlockSpec((1, num_classes), lambda i: (0, 0)),
            pl.BlockSpec((1, num_classes), lambda i: (0, 0)),
        ],
        out_specs=pl.BlockSpec((tile_b, num_classes), lambda i: (i, 0)),
        compiler_params=pltpu.CompilerParams(
            # No reduction; every batch tile is independent -> megacore-shardable.
            dimension_semantics=("parallel",),
        ),
    )(logits, w_row, b_row)


def diagonal_model_forward(logits: jax.Array, W: jax.Array, b: jax.Array,
                           *, tile_b: int | None = None,
                           force_pallas: bool = False) -> jax.Array:
    """DiagonalModel.forward: logits @ diag(W) + b.

    logits: (batch, num_classes)
    W, b:   (num_classes,)
    """
    batch, num_classes = logits.shape
    w_row = W.reshape(1, num_classes).astype(logits.dtype)
    b_row = b.reshape(1, num_classes).astype(logits.dtype)

    if not force_pallas and batch * num_classes < _PALLAS_MIN_ELEMENTS:
        # Tiny problem: let XLA fuse the FMA into neighboring ops for free.
        return logits * w_row + b_row

    itemsize = jnp.dtype(logits.dtype).itemsize
    if tile_b is None:
        tile_b = _choose_tile_b(batch, num_classes, itemsize)
    else:
        tile_b = min(tile_b, batch)
        if batch > 8:
            tile_b = max(8, (tile_b // 8) * 8)

    return _diagonal_pallas(logits, w_row, b_row, tile_b)


if __name__ == "__main__":
    key = jax.random.PRNGKey(0)
    k1, k2 = jax.random.split(key)

    # Case 1: tiny calibration-style shape, forced through the Pallas path to
    # exercise the kernel (single grid step, block == full extent).
    batch1, classes1 = 8, 16
    logits1 = jax.random.normal(k1, (batch1, classes1), dtype=jnp.float32)
    W1 = jnp.ones((classes1,), dtype=jnp.float32)   # module's default init
    b1 = jnp.zeros((classes1,), dtype=jnp.float32)  # module's default init
    out1 = jax.block_until_ready(
        diagonal_model_forward(logits1, W1, b1, force_pallas=True))
    ref1 = logits1 @ jnp.diag(W1) + b1
    assert out1.shape == (batch1, classes1)
    assert jnp.allclose(out1, ref1, atol=1e-6), "case 1 mismatch vs reference"

    # Case 2: moderate shape with an explicit small tile so the batch-tiled,
    # multi-step ("parallel") grid path is exercised (4 grid steps).
    batch2, classes2 = 512, 128
    logits2 = jax.random.normal(k2, (batch2, classes2), dtype=jnp.float32)
    W2 = jax.random.normal(jax.random.PRNGKey(1), (classes2,), dtype=jnp.float32)
    b2 = jax.random.normal(jax.random.PRNGKey(2), (classes2,), dtype=jnp.float32)
    out2 = jax.block_until_ready(
        diagonal_model_forward(logits2, W2, b2, tile_b=128, force_pallas=True))
    ref2 = logits2 @ jnp.diag(W2) + b2
    assert out2.shape == (batch2, classes2)
    assert jnp.allclose(out2, ref2, atol=1e-5), "case 2 mismatch vs reference"

    print("KERNEL_OK")
</pallas_src>

<mosaic_0001>
module attributes {stable_mosaic.version = 11 : i64} {
  func.func @_diagonal_kernel(%arg0: i32, %arg1: memref<8x16xf32, #tpu.memory_space<vmem>>, %arg2: memref<1x16xf32, #tpu.memory_space<vmem>>, %arg3: memref<1x16xf32, #tpu.memory_space<vmem>>, %arg4: memref<8x16xf32, #tpu.memory_space<vmem>>) attributes {dimension_semantics = [#tpu.dimension_semantics<parallel>], iteration_bounds = array<i64: 1>, scalar_prefetch = 0 : i64, scratch_operands = 0 : i64, tpu.core_type = #tpu.core_type<tc>, window_params = [{transform_indices = @transform_0, window_bounds = array<i64: 8, 16>}, {pipeline_mode = #tpu.pipeline_mode<synchronous>, transform_indices = @transform_1, window_bounds = array<i64: 1, 16>}, {pipeline_mode = #tpu.pipeline_mode<synchronous>, transform_indices = @transform_2, window_bounds = array<i64: 1, 16>}, {transform_indices = @transform_3, window_bounds = array<i64: 8, 16>}]} {
    %c0 = arith.constant 0 : index
    %c0_0 = arith.constant 0 : index
    %0 = vector.load %arg1[%c0, %c0_0] : memref<8x16xf32, #tpu.memory_space<vmem>>, vector<8x16xf32>
    %c0_1 = arith.constant 0 : index
    %c0_2 = arith.constant 0 : index
    %1 = vector.load %arg2[%c0_1, %c0_2] : memref<1x16xf32, #tpu.memory_space<vmem>>, vector<1x16xf32>
    %2 = vector.broadcast %1 : vector<1x16xf32> to vector<8x16xf32>
    %3 = arith.mulf %0, %2 : vector<8x16xf32>
    %c0_3 = arith.constant 0 : index
    %c0_4 = arith.constant 0 : index
    %4 = vector.load %arg3[%c0_3, %c0_4] : memref<1x16xf32, #tpu.memory_space<vmem>>, vector<1x16xf32>
    %5 = vector.broadcast %4 : vector<1x16xf32> to vector<8x16xf32>
    %6 = arith.addf %3, %5 : vector<8x16xf32>
    %c0_5 = arith.constant 0 : index
    %c0_6 = arith.constant 0 : index
    %7 = vector.load %arg4[%c0_5, %c0_6] : memref<8x16xf32, #tpu.memory_space<vmem>>, vector<8x16xf32>
    tpu.vector_store %arg4[%c0_5, %c0_6], %6 {strides = array<i32>} : memref<8x16xf32, #tpu.memory_space<vmem>>, vector<8x16xf32>,
    return
  }
  func.func @transform_0(%arg0: i32) -> (i32, i32) {
    %c0_i32 = arith.constant 0 : i32
    %c0_i32_0 = arith.constant 0 : i32
    return %arg0, %c0_i32 : i32, i32
  }
  func.func @transform_1(%arg0: i32) -> (i32, i32) {
    %c0_i32 = arith.constant 0 : i32
    %c0_i32_0 = arith.constant 0 : i32
    %c0_i32_1 = arith.constant 0 : i32
    return %c0_i32, %c0_i32_0 : i32, i32
  }
  func.func @transform_2(%arg0: i32) -> (i32, i32) {
    %c0_i32 = arith.constant 0 : i32
    %c0_i32_0 = arith.constant 0 : i32
    %c0_i32_1 = arith.constant 0 : i32
    return %c0_i32, %c0_i32_0 : i32, i32
  }
  func.func @transform_3(%arg0: i32) -> (i32, i32) {
    %c0_i32 = arith.constant 0 : i32
    %c0_i32_0 = arith.constant 0 : i32
    return %arg0, %c0_i32 : i32, i32
  }
}

</mosaic_0001>

<llo_original>
// kernel: tpu_custom_call.1
$region0: #{tpu_custom_call.1}
  #allocation0 [shape = 'u32[]', space=smem, size = 0x4, offset = 0x4, fixed_abs, tag = 'smem constant byte address 0x4 - core index']
  #allocation1 [shape = 'u32[144,128]{1,0:T(1,128)}', space=vmem, size = 0x12000, scoped, tag = 'internal scratch']
  %s0 = inlined_call_operand.hbm [shape: f32[8,16], index: 0, kind: input, shape index: {}]
  %s1 = inlined_call_operand.vmem [shape: f32[1,16], index: 1, kind: input, shape index: {}]
  %s2 = inlined_call_operand.vmem [shape: f32[1,16], index: 2, kind: input, shape index: {}]
  %s3 = inlined_call_operand.hbm [shape: f32[8,16], index: 3, kind: output, shape index: {}]
  %s4 = sld [smem:[#allocation0]]
  $region26: #{tpu_custom_call.1} parent=0
    _
  %s6 = ssub.s32 1, %s4
  %s7 = scalar_select 0, %s6, %s4
  $region1: #{tpu_custom_call.1} parent=0
    #allocation2 [shape = 'u8[4096]{0}', space=vmem, size = 0x1000, scoped, tag = 'input window, operand 0, single buffered']
    #allocation3 [shape = 's32[1]{0}', space=sflag, size = 0x4, scoped, tag = 'scoped memory for tpu_custom_call.1']
    #allocation4 [shape = 's32[1]{0}', space=sflag, size = 0x4, scoped, tag = 'scoped memory for tpu_custom_call.1']
    #allocation5 [shape = 'u8[4096]{0}', space=vmem, size = 0x1000, scoped, tag = 'output window, operand 0, single buffered']
    %8 = vsyncpa [#allocation3], 0
    %9 = vsyncpa [#allocation4], 0
    // Predicated region
    $region2: #{tpu_custom_call.1} parent=1 // pred_check
      _
    $region3: #{tpu_custom_call.1} parent=1 // pred_check_branch
      %11 = sbr.rel (0) target = $region5
    $region4: #{tpu_custom_call.1} parent=1 // pred_region
      %s13 = ssub.s32 128, 128
      %14 = vsyncadd [#allocation3], %s13
      %s16 = sshll.u32 [#allocation2], 4
      %s17 = int_to_ptr.vmem [resolvable:$true] %s16
      %19 = dma.hbm_to_vmem [thread:$0]  %s0, 128, %s17, [#allocation3]
    $region5: #{tpu_custom_call.1} parent=1 // pred_fallthru
      _
    // Predicated region
    $region6: #{tpu_custom_call.1} parent=1 // pred_check
      _
    $region7: #{tpu_custom_call.1} parent=1 // pred_check_branch
      %21 = sbr.rel (0) target = $region9
    $region8: #{tpu_custom_call.1} parent=1 // pred_region
      _
    $region9: #{tpu_custom_call.1} parent=1 // pred_fallthru
      _
    // Predicated region
    $region10: #{tpu_custom_call.1} parent=1 // pred_check
      _
    $region11: #{tpu_custom_call.1} parent=1 // pred_check_branch
      %23 = sbr.rel (0) target = $region13
    $region12: #{tpu_custom_call.1} parent=1 // pred_region
      _
    $region13: #{tpu_custom_call.1} parent=1 // pred_fallthru
      _
    // Predicated region
    $region14: #{tpu_custom_call.1} parent=1 // pred_check
      _
    $region15: #{tpu_custom_call.1} parent=1 // pred_check_branch
      %25 = sbr.rel (0) target = $region17
    $region16: #{tpu_custom_call.1} parent=1 // pred_region
      %26 = dma.done [#allocation3], 128
    $region17: #{tpu_custom_call.1} parent=1 // pred_fallthru
      _
    %v27 = vld [vmem:[#allocation2] sm:$0xff]
    %v28 = vld [vmem:[%s1] sm:$0x1]
    %v30 = vlaneseq
    %v31 = vshrl.u32 %v30, 7
    %v32 = vsub.s32 0, %v31
    %v33 = vrot.slane %v28, %v32
    %v35 = vmul.f32 %v27, %v33
    %v36 = vld [vmem:[%s2] sm:$0x1]
    %v38 = vlaneseq
    %v39 = vshrl.u32 %v38, 7
    %v40 = vsub.s32 0, %v39
    %v41 = vrot.slane %v36, %v40
    %v43 = vadd.f32 %v35, %v41
    %vm44 = vcmask 130048
    %45 = vst.msk [vmem:[#allocation5] sm:$0xff] %vm44, %v43
    // Predicated region
    $region18: #{tpu_custom_call.1} parent=1 // pred_check
      _
    $region19: #{tpu_custom_call.1} parent=1 // pred_check_branch
      %47 = sbr.rel (0) target = $region21
    $region20: #{tpu_custom_call.1} parent=1 // pred_region
      %s49 = ssub.s32 128, 128
      %50 = vsyncadd [#allocation4], %s49
      %s52 = sshll.u32 [#allocation5], 4
      %s53 = int_to_ptr.vmem [resolvable:$true] %s52
      %55 = dma.vmem_to_hbm [thread:$0]  %s53, 128, %s3, [#allocation4]
    $region21: #{tpu_custom_call.1} parent=1 // pred_fallthru
      _
    // Predicated region
    $region22: #{tpu_custom_call.1} parent=1 // pred_check
      _
    $region23: #{tpu_custom_call.1} parent=1 // pred_check_branch
      %57 = sbr.rel (0) target = $region25
    $region24: #{tpu_custom_call.1} parent=1 // pred_region
      %58 = dma.done [#allocation4], 128
    $region25: #{tpu_custom_call.1} parent=1 // pred_fallthru
      _
    %59 = vsyncpa [#allocation3], 1
    %60 = vsyncpa [#allocation4], 1

</llo_original>
